<compile_context>
chip_gen: v7x
topology: tpu7x:2x2x1
jax: 0.10.0
libtpu: 0.0.40
codegen_flags: <defaults>
</compile_context>

<pallas_src>
import functools

import jax
import jax.numpy as jnp
from jax.experimental import pallas as pl
from jax.experimental.pallas import tpu as pltpu

REWARD_WEIGHTS = {"dscr": 1.0, "mle": 0.2}

_LANE = 128
_MAX_VOCAB_TILE = 16384              # upper cap on the streaming vocab tile
_GATHER_WINDOW = 512                 # lanes DMA'd per row on the gather path (2 KiB f32)
_GATHER_MIN_ROW_BYTES = 64 * 1024    # auto-enable gather path when V*itemsize >= 64 KiB


def _vmem_limit_bytes():
    """Generation-aware scoped-VMEM limit: ~3/4 of physical, in [48 MiB, 96 MiB]."""
    try:
        phys = int(pltpu.get_tpu_info().vmem_capacity_bytes)
    except Exception:
        phys = 64 * 1024 * 1024      # conservative default (v7x has 64 MiB / core)
    return max(48 * 1024 * 1024, min(phys * 3 // 4, 96 * 1024 * 1024))


# ---------------------------------------------------------------------------
# Streaming path: full probs scan, tiled (row, vocab) grid
# ---------------------------------------------------------------------------

def _pick_stream_tiles(n, v, itemsize, vmem_limit, max_vocab_tile):
    # Row tile: full extent for small N (block == full dim, no (8,128) rule needed);
    # otherwise a multiple of 128 so the lane-dense (1, TM) blocks are legal, with
    # >= 2 row tiles whenever N >= 256 (v7x has 2 TensorCores).
    if n < 256:
        tm = n
    elif n < 512:
        tm = 128
    else:
        tm = 256
    # Vocab tile: whole vocab if it fits, otherwise the largest multiple of 128 such
    # that a double-buffered probs tile uses <= ~half of the scoped VMEM limit.
    per_buf = vmem_limit // 4
    tv_cap = max(_LANE, (per_buf // (max(tm, 1) * itemsize)) // _LANE * _LANE)
    tv_cap = min(tv_cap, max(_LANE, max_vocab_tile))
    tv = v if v <= tv_cap else tv_cap
    return tm, tv


def _streaming_kernel(n_rows, probs_ref, tgt_ref, dscr_ref, mle_ref,
                      policy_ref, contrib_ref):
    """Grid = (row_tiles, vocab_tiles); vocab is the 'arbitrary' reduction axis."""
    i = pl.program_id(0)
    j = pl.program_id(1)
    tm, tv = probs_ref.shape

    @pl.when(j == 0)
    def _init():
        policy_ref[...] = jnp.zeros_like(policy_ref)

    probs = probs_ref[...]                                         # (TM, TV) native dtype
    local_tgt = tgt_ref[...] - j * tv                              # (TM, 1) shifted target
    lane_ids = jax.lax.broadcasted_iota(jnp.int32, (tm, tv), 1)    # loop-invariant iota
    gathered = jnp.where(lane_ids == local_tgt, probs, 0)          # <=1 nonzero lane / row
    partial = jnp.sum(gathered, axis=-1).astype(jnp.float32)       # (TM,) exact in any dtype
    policy_ref[...] += partial[None, :]

    @pl.when(j == pl.num_programs(1) - 1)
    def _finalize():
        rewards = (REWARD_WEIGHTS["dscr"] * dscr_ref[...]
                   + REWARD_WEIGHTS["mle"] * mle_ref[...])         # (1, TM)
        # Static row mask: ragged row tiles read unspecified HBM (possibly NaN); never
        # let it reach the loss partials (n_rows is a Python constant at trace time).
        row_ids = i * tm + jax.lax.broadcasted_iota(jnp.int32, (1, tm), 1)
        contrib_ref[...] = jnp.where(row_ids < n_rows,
                                     policy_ref[...] * rewards, 0.0)


def _policy_update_streaming(probs2d, tgt, dscr, mle, *, max_vocab_tile):
    n, v = probs2d.shape
    vmem_limit = _vmem_limit_bytes()
    tm, tv = _pick_stream_tiles(n, v, probs2d.dtype.itemsize, vmem_limit, max_vocab_tile)

    tgt2d = tgt.reshape(n, 1)
    dscr2d = dscr.reshape(1, n)                    # lane-dense side inputs
    mle2d = mle.reshape(1, n)

    grid = (pl.cdiv(n, tm), pl.cdiv(v, tv))        # ragged edges handled in-kernel
    kernel = functools.partial(_streaming_kernel, n)

    policy, contrib = pl.pallas_call(
        kernel,
        out_shape=(
            jax.ShapeDtypeStruct((1, n), jnp.float32),   # gathered policy probs
            jax.ShapeDtypeStruct((1, n), jnp.float32),   # per-row loss contributions
        ),
        grid_spec=pltpu.PrefetchScalarGridSpec(
            num_scalar_prefetch=0,
            grid=grid,
            in_specs=[
                pl.BlockSpec((tm, tv), lambda i, j: (i, j)),   # probs stream
                pl.BlockSpec((tm, 1), lambda i, j: (i, 0)),    # targets
                pl.BlockSpec((1, tm), lambda i, j: (0, i)),    # dscr rewards
                pl.BlockSpec((1, tm), lambda i, j: (0, i)),    # mle rewards
            ],
            out_specs=(
                pl.BlockSpec((1, tm), lambda i, j: (0, i)),
                pl.BlockSpec((1, tm), lambda i, j: (0, i)),
            ),
        ),
        compiler_params=pltpu.CompilerParams(
            dimension_semantics=("parallel", "arbitrary"),
            vmem_limit_bytes=vmem_limit,
        ),
    )(probs2d, tgt2d, dscr2d, mle2d)

    policy_flat = policy[0, :]
    loss = -jnp.sum(contrib[0, :])   # tiny O(N) sum; keeps the row axis fully parallel
    return policy_flat, loss


# ---------------------------------------------------------------------------
# Gather-DMA path: per-row window DMAs addressed from SMEM-prefetched targets
# ---------------------------------------------------------------------------

def _gather_kernel(n_rows, v, row_block, window,
                   tgt_smem, probs_hbm, tgt_ref, dscr_ref, mle_ref,
                   policy_ref, contrib_ref, win_buf, sem):
    """Grid = (row_blocks,). One small DMA per row: only the 128-aligned `window`-lane
    slice of the row that contains the target token, instead of the whole (V,) row."""
    i = pl.program_id(0)
    base = i * row_block

    @pl.loop(0, row_block)
    def _issue(r):
        row = jnp.minimum(base + r, n_rows - 1)          # clamp ragged tail rows (valid read)
        t = tgt_smem[base + r]
        start = jnp.minimum((t // _LANE) * _LANE, v - window)
        pltpu.make_async_copy(probs_hbm.at[row, pl.ds(start, window)],
                              win_buf.at[r], sem.at[0]).start()

    # TODO(synk): double-buffer the gather windows across row blocks (issue block i+1
    # before waiting on block i) if a profile shows exposed DMA latency.
    @pl.loop(0, row_block)
    def _wait(r):
        pltpu.make_async_copy(probs_hbm.at[0, pl.ds(0, window)],
                              win_buf.at[r], sem.at[0]).wait()

    # Vectorized in-window gather (same start arithmetic as the DMA issue above).
    tgt = tgt_ref[...]                                               # (R, 1) int32
    start = jnp.minimum((tgt // _LANE) * _LANE, v - window)
    local = tgt - start                                              # (R, 1) in [0, window)
    win = win_buf[...]                                               # (R, W) native dtype
    lane_ids = jax.lax.broadcasted_iota(jnp.int32, (row_block, window), 1)
    partial = jnp.sum(jnp.where(lane_ids == local, win, 0),
                      axis=-1).astype(jnp.float32)                   # (R,)
    policy_ref[...] = partial[None, :]

    rewards = (REWARD_WEIGHTS["dscr"] * dscr_ref[...]
               + REWARD_WEIGHTS["mle"] * mle_ref[...])               # (1, R)
    row_ids = base + jax.lax.broadcasted_iota(jnp.int32, (1, row_block), 1)
    contrib_ref[...] = jnp.where(row_ids < n_rows, partial[None, :] * rewards, 0.0)


def _policy_update_gather(probs2d, tgt, dscr, mle):
    n, v = probs2d.shape
    dtype = probs2d.dtype
    row_block = min(256, ((max(n, 1) + _LANE - 1) // _LANE) * _LANE)
    n_pad = ((n + row_block - 1) // row_block) * row_block

    # Pad only the tiny O(N) side arrays; probs itself is never padded / copied.
    # TODO(synk): for N large enough to overflow SMEM (~hundreds of K rows), chunk the
    # scalar-prefetched target table across multiple pallas_calls.
    if n_pad != n:
        tgt = jnp.pad(tgt, (0, n_pad - n))
        dscr = jnp.pad(dscr, (0, n_pad - n))
        mle = jnp.pad(mle, (0, n_pad - n))

    tgt2d = tgt.reshape(n_pad, 1)
    dscr2d = dscr.reshape(1, n_pad)
    mle2d = mle.reshape(1, n_pad)

    kernel = functools.partial(_gather_kernel, n, v, row_block, _GATHER_WINDOW)

    policy, contrib = pl.pallas_call(
        kernel,
        out_shape=(
            jax.ShapeDtypeStruct((1, n_pad), jnp.float32),
            jax.ShapeDtypeStruct((1, n_pad), jnp.float32),
        ),
        grid_spec=pltpu.PrefetchScalarGridSpec(
            num_scalar_prefetch=1,                          # targets -> SMEM for addressing
            grid=(n_pad // row_block,),
            in_specs=[
                pl.BlockSpec(memory_space=pl.ANY),          # probs stay in HBM
                pl.BlockSpec((row_block, 1), lambda i, tgt: (i, 0)),
                pl.BlockSpec((1, row_block), lambda i, tgt: (0, i)),
                pl.BlockSpec((1, row_block), lambda i, tgt: (0, i)),
            ],
            out_specs=(
                pl.BlockSpec((1, row_block), lambda i, tgt: (0, i)),
                pl.BlockSpec((1, row_block), lambda i, tgt: (0, i)),
            ),
            scratch_shapes=[
                pltpu.VMEM((row_block, _GATHER_WINDOW), dtype),
                pltpu.SemaphoreType.DMA((1,)),
            ],
        ),
        compiler_params=pltpu.CompilerParams(
            dimension_semantics=("arbitrary",),
            vmem_limit_bytes=_vmem_limit_bytes(),
        ),
    )(tgt, probs2d, tgt2d, dscr2d, mle2d)

    return policy[0, :n], -jnp.sum(contrib[0, :n])


# ---------------------------------------------------------------------------
# Dispatcher (matches the PyTorch module's forward semantics)
# ---------------------------------------------------------------------------

def policy_update(probs, targets, dscr_rewards, mle_rewards, *,
                  gather=None, max_vocab_tile=_MAX_VOCAB_TILE):
    """probs: (..., V) float32/bfloat16 log-probs, targets/rewards: (...,).
    Returns (policy_probs (N,), loss scalar) with N = prod(leading dims)."""
    v = probs.shape[-1]
    n = probs.size // v
    probs2d = probs.reshape(n, v)                      # bf16 inputs halve HBM traffic
    tgt = targets.reshape(n).astype(jnp.int32)
    dscr = dscr_rewards.reshape(n).astype(jnp.float32)
    mle = mle_rewards.reshape(n).astype(jnp.float32)

    if gather is None:
        gather = v * probs2d.dtype.itemsize >= _GATHER_MIN_ROW_BYTES
    gather = bool(gather) and v >= _GATHER_WINDOW      # window must fit inside a row

    if gather:
        return _policy_update_gather(probs2d, tgt, dscr, mle)
    return _policy_update_streaming(probs2d, tgt, dscr, mle,
                                    max_vocab_tile=max_vocab_tile)


# ---------------------------------------------------------------------------
# Self-test
# ---------------------------------------------------------------------------

if __name__ == "__main__":
    key = jax.random.PRNGKey(0)

    def reference(probs, targets, dscr, mle):
        v = probs.shape[-1]
        p2 = probs.reshape(-1, v).astype(jnp.float32)
        t = targets.reshape(-1)
        pol = p2[jnp.arange(p2.shape[0]), t]
        rew = (REWARD_WEIGHTS["dscr"] * dscr.reshape(-1).astype(jnp.float32)
               + REWARD_WEIGHTS["mle"] * mle.reshape(-1).astype(jnp.float32))
        return pol, -jnp.dot(pol, rew)

    def make_inputs(key, b, s, v):
        k1, k2, k3, k4 = jax.random.split(key, 4)
        probs = jax.nn.log_softmax(jax.random.normal(k1, (b, s, v), jnp.float32), axis=-1)
        targets = jax.random.randint(k2, (b, s), 0, v, jnp.int32)
        dscr = jax.random.uniform(k3, (b, s), jnp.float32)
        mle = jax.random.uniform(k4, (b, s), jnp.float32)
        return probs, targets, dscr, mle

    # 1) small base case (streaming path), shapes consistent with (batch, seq, vocab)
    k, key = jax.random.split(key)
    probs, targets, dscr, mle = make_inputs(k, 2, 8, 32)
    policy, loss = policy_update(probs, targets, dscr, mle)
    jax.block_until_ready((policy, loss))
    ref_p, ref_l = reference(probs, targets, dscr, mle)
    assert jnp.allclose(policy, ref_p, atol=1e-6), "streaming policy mismatch"
    assert jnp.allclose(loss, ref_l, rtol=1e-5, atol=1e-4), "streaming loss mismatch"

    # 2) ragged row + vocab tiles on the streaming path (forced small vocab tile)
    k, key = jax.random.split(key)
    probs, targets, dscr, mle = make_inputs(k, 3, 100, 1000)
    policy, loss = policy_update(probs, targets, dscr, mle, max_vocab_tile=128)
    jax.block_until_ready((policy, loss))
    ref_p, ref_l = reference(probs, targets, dscr, mle)
    assert jnp.allclose(policy, ref_p, atol=1e-6), "ragged policy mismatch"
    assert jnp.allclose(loss, ref_l, rtol=1e-5, atol=1e-3), "ragged loss mismatch"

    # 3) gather-DMA path (forced here; auto-selected when V*itemsize >= 64 KiB)
    k, key = jax.random.split(key)
    probs, targets, dscr, mle = make_inputs(k, 2, 8, 2048)
    policy, loss = policy_update(probs, targets, dscr, mle, gather=True)
    jax.block_until_ready((policy, loss))
    ref_p, ref_l = reference(probs, targets, dscr, mle)
    assert jnp.allclose(policy, ref_p, atol=1e-6), "gather policy mismatch"
    assert jnp.allclose(loss, ref_l, rtol=1e-5, atol=1e-4), "gather loss mismatch"

    print("KERNEL_OK")
</pallas_src>

<mosaic_0001>
module attributes {stable_mosaic.version = 11 : i64} {
  func.func @_streaming_kernel(%arg0: i32, %arg1: i32, %arg2: memref<16x32xf32, #tpu.memory_space<vmem>>, %arg3: memref<16x1xi32, #tpu.memory_space<vmem>>, %arg4: memref<1x16xf32, #tpu.memory_space<vmem>>, %arg5: memref<1x16xf32, #tpu.memory_space<vmem>>, %arg6: memref<1x16xf32, #tpu.memory_space<vmem>>, %arg7: memref<1x16xf32, #tpu.memory_space<vmem>>) attributes {dimension_semantics = [#tpu.dimension_semantics<parallel>, #tpu.dimension_semantics<arbitrary>], iteration_bounds = array<i64: 1, 1>, scalar_prefetch = 0 : i64, scratch_operands = 0 : i64, tpu.core_type = #tpu.core_type<tc>, window_params = [{transform_indices = @transform_0, window_bounds = array<i64: 16, 32>}, {transform_indices = @transform_1, window_bounds = array<i64: 16, 1>}, {transform_indices = @transform_2, window_bounds = array<i64: 1, 16>}, {transform_indices = @transform_3, window_bounds = array<i64: 1, 16>}, {transform_indices = @transform_4, window_bounds = array<i64: 1, 16>}, {transform_indices = @transform_5, window_bounds = array<i64: 1, 16>}]} {
    %c0_i32 = arith.constant 0 : i32
    %0 = arith.cmpi eq, %arg1, %c0_i32 : i32
    %1 = arith.extui %0 : i1 to i32
    %c0_i32_0 = arith.constant 0 : i32
    %2 = arith.cmpi ne, %1, %c0_i32_0 : i32
    scf.if %2 {
      %cst_11 = arith.constant 0.000000e+00 : f32
      %22 = vector.broadcast %cst_11 : f32 to vector<1x16xf32>
      %c0_12 = arith.constant 0 : index
      %c0_13 = arith.constant 0 : index
      %23 = vector.load %arg6[%c0_12, %c0_13] : memref<1x16xf32, #tpu.memory_space<vmem>>, vector<1x16xf32>
      tpu.vector_store %arg6[%c0_12, %c0_13], %22 {strides = array<i32>} : memref<1x16xf32, #tpu.memory_space<vmem>>, vector<1x16xf32>,
    } else {
    }
    %c0 = arith.constant 0 : index
    %c0_1 = arith.constant 0 : index
    %3 = vector.load %arg2[%c0, %c0_1] : memref<16x32xf32, #tpu.memory_space<vmem>>, vector<16x32xf32>
    %c0_2 = arith.constant 0 : index
    %c0_3 = arith.constant 0 : index
    %4 = vector.load %arg3[%c0_2, %c0_3] : memref<16x1xi32, #tpu.memory_space<vmem>>, vector<16x1xi32>
    %c32_i32 = arith.constant 32 : i32
    %5 = arith.muli %arg1, %c32_i32 : i32
    %6 = vector.broadcast %5 : i32 to vector<16x1xi32>
    %7 = arith.subi %4, %6 : vector<16x1xi32>
    %8 = tpu.iota {dimensions = array<i32: 1>} : vector<16x32xi32>
    %9 = vector.broadcast %7 : vector<16x1xi32> to vector<16x32xi32>
    %10 = arith.cmpi eq, %8, %9 : vector<16x32xi32>
    %c0_i32_4 = arith.constant 0 : i32
    %11 = arith.sitofp %c0_i32_4 : i32 to f32
    %12 = vector.broadcast %11 : f32 to vector<16x32xf32>
    %13 = arith.select %10, %3, %12 : vector<16x32xi1>, vector<16x32xf32>
    %cst = arith.constant dense<0.000000e+00> : vector<16xf32>
    %14 = vector.multi_reduction <add>, %13, %cst [1] : vector<16x32xf32> to vector<16xf32>
    %c0_5 = arith.constant 0 : index
    %c0_6 = arith.constant 0 : index
    %15 = vector.load %arg6[%c0_5, %c0_6] : memref<1x16xf32, #tpu.memory_space<vmem>>, vector<1x16xf32>
    %16 = vector.shape_cast %14 : vector<16xf32> to vector<1x16xf32>
    %17 = arith.addf %15, %16 : vector<1x16xf32>
    %c0_7 = arith.constant 0 : index
    %c0_8 = arith.constant 0 : index
    %18 = vector.load %arg6[%c0_7, %c0_8] : memref<1x16xf32, #tpu.memory_space<vmem>>, vector<1x16xf32>
    tpu.vector_store %arg6[%c0_7, %c0_8], %17 {strides = array<i32>} : memref<1x16xf32, #tpu.memory_space<vmem>>, vector<1x16xf32>,
    %c0_i32_9 = arith.constant 0 : i32
    %19 = arith.cmpi eq, %arg1, %c0_i32_9 : i32
    %20 = arith.extui %19 : i1 to i32
    %c0_i32_10 = arith.constant 0 : i32
    %21 = arith.cmpi ne, %20, %c0_i32_10 : i32
    scf.if %21 {
      %c0_11 = arith.constant 0 : index
      %c0_12 = arith.constant 0 : index
      %22 = vector.load %arg4[%c0_11, %c0_12] : memref<1x16xf32, #tpu.memory_space<vmem>>, vector<1x16xf32>
      %cst_13 = arith.constant 1.000000e+00 : f32
      %23 = vector.broadcast %cst_13 : f32 to vector<1x16xf32>
      %24 = arith.mulf %23, %22 : vector<1x16xf32>
      %c0_14 = arith.constant 0 : index
      %c0_15 = arith.constant 0 : index
      %25 = vector.load %arg5[%c0_14, %c0_15] : memref<1x16xf32, #tpu.memory_space<vmem>>, vector<1x16xf32>
      %cst_16 = arith.constant 2.000000e-01 : f32
      %26 = vector.broadcast %cst_16 : f32 to vector<1x16xf32>
      %27 = arith.mulf %26, %25 : vector<1x16xf32>
      %28 = arith.addf %24, %27 : vector<1x16xf32>
      %c16_i32 = arith.constant 16 : i32
      %29 = arith.muli %arg0, %c16_i32 : i32
      %30 = tpu.iota {dimensions = array<i32: 1>} : vector<1x16xi32>
      %31 = vector.broadcast %29 : i32 to vector<1x16xi32>
      %32 = arith.addi %31, %30 : vector<1x16xi32>
      %c16_i32_17 = arith.constant 16 : i32
      %33 = vector.broadcast %c16_i32_17 : i32 to vector<1x16xi32>
      %34 = arith.cmpi slt, %32, %33 : vector<1x16xi32>
      %c0_18 = arith.constant 0 : index
      %c0_19 = arith.constant 0 : index
      %35 = vector.load %arg6[%c0_18, %c0_19] : memref<1x16xf32, #tpu.memory_space<vmem>>, vector<1x16xf32>
      %36 = arith.mulf %35, %28 : vector<1x16xf32>
      %cst_20 = arith.constant 0.000000e+00 : f32
      %37 = vector.broadcast %cst_20 : f32 to vector<1x16xf32>
      %38 = arith.select %34, %36, %37 : vector<1x16xi1>, vector<1x16xf32>
      %c0_21 = arith.constant 0 : index
      %c0_22 = arith.constant 0 : index
      %39 = vector.load %arg7[%c0_21, %c0_22] : memref<1x16xf32, #tpu.memory_space<vmem>>, vector<1x16xf32>
      tpu.vector_store %arg7[%c0_21, %c0_22], %38 {strides = array<i32>} : memref<1x16xf32, #tpu.memory_space<vmem>>, vector<1x16xf32>,
    } else {
    }
    return
  }
  func.func @transform_0(%arg0: i32, %arg1: i32) -> (i32, i32) {
    %c0_i32 = arith.constant 0 : i32
    return %arg0, %arg1 : i32, i32
  }
  func.func @transform_1(%arg0: i32, %arg1: i32) -> (i32, i32) {
    %c0_i32 = arith.constant 0 : i32
    %c0_i32_0 = arith.constant 0 : i32
    return %arg0, %c0_i32 : i32, i32
  }
  func.func @transform_2(%arg0: i32, %arg1: i32) -> (i32, i32) {
    %c0_i32 = arith.constant 0 : i32
    %c0_i32_0 = arith.constant 0 : i32
    return %c0_i32, %arg0 : i32, i32
  }
  func.func @transform_3(%arg0: i32, %arg1: i32) -> (i32, i32) {
    %c0_i32 = arith.constant 0 : i32
    %c0_i32_0 = arith.constant 0 : i32
    return %c0_i32, %arg0 : i32, i32
  }
  func.func @transform_4(%arg0: i32, %arg1: i32) -> (i32, i32) {
    %c0_i32 = arith.constant 0 : i32
    %c0_i32_0 = arith.constant 0 : i32
    return %c0_i32, %arg0 : i32, i32
  }
  func.func @transform_5(%arg0: i32, %arg1: i32) -> (i32, i32) {
    %c0_i32 = arith.constant 0 : i32
    %c0_i32_0 = arith.constant 0 : i32
    return %c0_i32, %arg0 : i32, i32
  }
}

</mosaic_0001>

<llo_original>
// kernel: tpu_custom_call.1
$region0: #{tpu_custom_call.1}
  #allocation0 [shape = 'u32[]', space=smem, size = 0x4, offset = 0x4, fixed_abs, tag = 'smem constant byte address 0x4 - core index']
  #allocation1 [shape = 'u32[144,128]{1,0:T(1,128)}', space=vmem, size = 0x12000, scoped, tag = 'internal scratch']
  %s0 = inlined_call_operand.vmem [shape: f32[16,32], index: 0, kind: input, shape index: {}]
  %s1 = inlined_call_operand.vmem [shape: s32[16,1], index: 1, kind: input, shape index: {}]
  %s2 = inlined_call_operand.vmem [shape: f32[1,16], index: 2, kind: input, shape index: {}]
  %s3 = inlined_call_operand.vmem [shape: f32[1,16], index: 3, kind: input, shape index: {}]
  %s4 = inlined_call_operand.hbm [shape: f32[1,16], index: 4, kind: output, shape index: {0}]
  %s5 = inlined_call_operand.hbm [shape: f32[1,16], index: 5, kind: output, shape index: {1}]
  %6 = xla_tuple %s4, %s5
  %s7 = sld [smem:[#allocation0]]
  $region42: #{tpu_custom_call.1} parent=0
    _
  %s9 = ssub.s32 1, %s7
  %s10 = scalar_select 0, %s9, %s7
  $region1: #{tpu_custom_call.1} parent=0
    #allocation2 [shape = 'u8[512]{0}', space=vmem, size = 0x400, scoped, tag = 'output window, operand 0, single buffered']
    #allocation3 [shape = 's32[1]{0}', space=sflag, size = 0x4, scoped, tag = 'scoped memory for tpu_custom_call.1']
    #allocation4 [shape = 'u8[512]{0}', space=vmem, size = 0x400, scoped, tag = 'output window, operand 1, single buffered']
    #allocation5 [shape = 's32[1]{0}', space=sflag, size = 0x4, scoped, tag = 'scoped memory for tpu_custom_call.1']
    %11 = vsyncpa [#allocation3], 0
    %12 = vsyncpa [#allocation5], 0
    // Predicated region
    $region2: #{tpu_custom_call.1} parent=1 // pred_check
      _
    $region3: #{tpu_custom_call.1} parent=1 // pred_check_branch
      %14 = sbr.rel (0) target = $region5
    $region4: #{tpu_custom_call.1} parent=1 // pred_region
      _
    $region5: #{tpu_custom_call.1} parent=1 // pred_fallthru
      _
    // Predicated region
    $region6: #{tpu_custom_call.1} parent=1 // pred_check
      _
    $region7: #{tpu_custom_call.1} parent=1 // pred_check_branch
      %16 = sbr.rel (0) target = $region9
    $region8: #{tpu_custom_call.1} parent=1 // pred_region
      _
    $region9: #{tpu_custom_call.1} parent=1 // pred_fallthru
      _
    // Predicated region
    $region10: #{tpu_custom_call.1} parent=1 // pred_check
      _
    $region11: #{tpu_custom_call.1} parent=1 // pred_check_branch
      %18 = sbr.rel (0) target = $region13
    $region12: #{tpu_custom_call.1} parent=1 // pred_region
      _
    $region13: #{tpu_custom_call.1} parent=1 // pred_fallthru
      _
    // Predicated region
    $region14: #{tpu_custom_call.1} parent=1 // pred_check
      _
    $region15: #{tpu_custom_call.1} parent=1 // pred_check_branch
      %20 = sbr.rel (0) target = $region17
    $region16: #{tpu_custom_call.1} parent=1 // pred_region
      _
    $region17: #{tpu_custom_call.1} parent=1 // pred_fallthru
      _
    %p21 = scmp.eq.s32.totalorder 0, 0
    // Predicated region
    $region18: #{tpu_custom_call.1} parent=1 // pred_check
      %p22 = pneg %p21
    $region19: #{tpu_custom_call.1} parent=1 // pred_check_branch
      %24 = sbr.rel (%p22) target = $region21
    $region20: #{tpu_custom_call.1} parent=1 // pred_region
      %vm25 = vcmask 122880
      %26 = vst.msk [vmem:[#allocation2] sm:$0x1] %vm25, 0.0
    $region21: #{tpu_custom_call.1} parent=1 // pred_fallthru
      _
    %v27 = vld [vmem:[%s0] sm:$0xff]
    %v28 = vld [vmem:[%s0 + $0x8] sm:$0xff]
    %v29 = vld [vmem:[%s1] sm:$0xff]
    %v30 = vld [vmem:[%s1 + $0x8] sm:$0xff]
    %s31 = smul.u32 0, 32
    %v32 = vstv %s31
    %v33 = vsub.s32 %v29, %v32
    %v34 = vsub.s32 %v30, %v32
    %v35 = vlaneseq
    %v36 = vand.u32 %v35, 127
    %37 = vset.pattern.permute.xlu0 0
    %38 = vperm.xlu0 %37, %v33
    %v39 = vpop.permute.xlu0 %38
    %40 = vset.pattern.permute.xlu0 0
    %41 = vperm.xlu0 %40, %v34
    %v42 = vpop.permute.xlu0 %41
    %vm43 = vcmp.eq.s32.totalorder %v36, %v39
    %vm44 = vcmp.eq.s32.totalorder %v36, %v42
    %v45 = vsel %vm43, %v27, 0.0
    %v46 = vsel %vm44, %v28, 0.0
    %vm47 = vcmask 261120
    %v48 = vsel %vm47, %v45, 0.0
    %49 = vadd.xlane.f32.xlu0 %v48
    %v50 = vpop.xlane.xlu0 %49
    %v51 = vsel %vm47, %v46, 0.0
    %52 = vadd.xlane.f32.xlu0 %v51
    %v53 = vpop.xlane.xlu0 %52
    %v54 = vld [vmem:[#allocation2] sm:$0x1]
    %v57 = vlaneseq
    %v58 = vshrl.u32 %v57, 7
    %v59 = vsub.s32 0, %v58
    %v60 = vrot.slane %v50, %v59
    %v61 = vlaneseq
    %v62 = vshrl.u32 %v61, 7
    %v63 = vsub.s32 1, %v62
    %v64 = vrot.slane %v50, %v63
    %v65 = vlaneseq
    %v66 = vshrl.u32 %v65, 7
    %v67 = vsub.s32 2, %v66
    %v68 = vrot.slane %v50, %v67
    %v69 = vlaneseq
    %v70 = vshrl.u32 %v69, 7
    %v71 = vsub.s32 3, %v70
    %v72 = vrot.slane %v50, %v71
    %v73 = vlaneseq
    %v74 = vshrl.u32 %v73, 7
    %v75 = vsub.s32 4, %v74
    %v76 = vrot.slane %v50, %v75
    %v77 = vlaneseq
    %v78 = vshrl.u32 %v77, 7
    %v79 = vsub.s32 5, %v78
    %v80 = vrot.slane %v50, %v79
    %v81 = vlaneseq
    %v82 = vshrl.u32 %v81, 7
    %v83 = vsub.s32 6, %v82
    %v84 = vrot.slane %v50, %v83
    %v85 = vlaneseq
    %v86 = vshrl.u32 %v85, 7
    %v87 = vsub.s32 7, %v86
    %v88 = vrot.slane %v50, %v87
    %v89 = vlaneseq
    %v90 = vshrl.u32 %v89, 7
    %v91 = vsub.s32 0, %v90
    %v92 = vrot.slane %v53, %v91
    %v93 = vlaneseq
    %v94 = vshrl.u32 %v93, 7
    %v95 = vsub.s32 1, %v94
    %v96 = vrot.slane %v53, %v95
    %v97 = vlaneseq
    %v98 = vshrl.u32 %v97, 7
    %v99 = vsub.s32 2, %v98
    %v100 = vrot.slane %v53, %v99
    %v101 = vlaneseq
    %v102 = vshrl.u32 %v101, 7
    %v103 = vsub.s32 3, %v102
    %v104 = vrot.slane %v53, %v103
    %v105 = vlaneseq
    %v106 = vshrl.u32 %v105, 7
    %v107 = vsub.s32 4, %v106
    %v108 = vrot.slane %v53, %v107
    %v109 = vlaneseq
    %v110 = vshrl.u32 %v109, 7
    %v111 = vsub.s32 5, %v110
    %v112 = vrot.slane %v53, %v111
    %v113 = vlaneseq
    %v114 = vshrl.u32 %v113, 7
    %v115 = vsub.s32 6, %v114
    %v116 = vrot.slane %v53, %v115
    %v117 = vlaneseq
    %v118 = vshrl.u32 %v117, 7
    %v119 = vsub.s32 7, %v118
    %v120 = vrot.slane %v53, %v119
    %v121 = vcombine.low %v60, %v64
    %v122 = vcombine.low %v68, %v72
    %v123 = vcombine.low %v76, %v80
    %v124 = vcombine.low %v84, %v88
    %v126 = vunpack.c.l.s4 1966171168
    %v127 = vunpack.c.0.s8 %v126
    %v128 = vlaneseq
    %v129 = vshrl.u32 %v128, 7
    %v130 = vsub.s32 %v127, %v129
    %v131 = vrot.slane %v121, %v130
    %v133 = vunpack.c.l.s4 1966171168
    %v134 = vunpack.c.0.s8 %v133
    %v135 = vlaneseq
    %v136 = vshrl.u32 %v135, 7
    %v137 = vsub.s32 %v134, %v136
    %v138 = vrot.slane %v122, %v137
    %v140 = vunpack.c.l.s4 1966171168
    %v141 = vunpack.c.0.s8 %v140
    %v142 = vlaneseq
    %v143 = vshrl.u32 %v142, 7
    %v144 = vsub.s32 %v141, %v143
    %v145 = vrot.slane %v123, %v144
    %v147 = vunpack.c.l.s4 1966171168
    %v148 = vunpack.c.0.s8 %v147
    %v149 = vlaneseq
    %v150 = vshrl.u32 %v149, 7
    %v151 = vsub.s32 %v148, %v150
    %v152 = vrot.slane %v124, %v151
    %v153 = vcombine.low %v131, %v138
    %v154 = vcombine.low %v145, %v152
    %v156 = vunpack.c.l.s4 1966171168
    %v157 = vunpack.c.0.s8 %v156
    %v158 = vlaneseq
    %v159 = vshrl.u32 %v158, 7
    %v160 = vsub.s32 %v157, %v159
    %v161 = vrot.slane %v153, %v160
    %v163 = vunpack.c.l.s4 1966171168
    %v164 = vunpack.c.0.s8 %v163
    %v165 = vlaneseq
    %v166 = vshrl.u32 %v165, 7
    %v167 = vsub.s32 %v164, %v166
    %v168 = vrot.slane %v154, %v167
    %v169 = vcombine.low %v161, %v168
    %v170 = vcombine.low %v92, %v96
    %v171 = vcombine.low %v100, %v104
    %v172 = vcombine.low %v108, %v112
    %v173 = vcombine.low %v116, %v120
    %v175 = vunpack.c.l.s4 1966171168
    %v176 = vunpack.c.0.s8 %v175
    %v177 = vlaneseq
    %v178 = vshrl.u32 %v177, 7
    %v179 = vsub.s32 %v176, %v178
    %v180 = vrot.slane %v170, %v179
    %v182 = vunpack.c.l.s4 1966171168
    %v183 = vunpack.c.0.s8 %v182
    %v184 = vlaneseq
    %v185 = vshrl.u32 %v184, 7
    %v186 = vsub.s32 %v183, %v185
    %v187 = vrot.slane %v171, %v186
    %v189 = vunpack.c.l.s4 1966171168
    %v190 = vunpack.c.0.s8 %v189
    %v191 = vlaneseq
    %v192 = vshrl.u32 %v191, 7
    %v193 = vsub.s32 %v190, %v192
    %v194 = vrot.slane %v172, %v193
    %v196 = vunpack.c.l.s4 1966171168
    %v197 = vunpack.c.0.s8 %v196
    %v198 = vlaneseq
    %v199 = vshrl.u32 %v198, 7
    %v200 = vsub.s32 %v197, %v199
    %v201 = vrot.slane %v173, %v200
    %v202 = vcombine.low %v180, %v187
    %v203 = vcombine.low %v194, %v201
    %v205 = vunpack.c.l.s4 1966171168
    %v206 = vunpack.c.0.s8 %v205
    %v207 = vlaneseq
    %v208 = vshrl.u32 %v207, 7
    %v209 = vsub.s32 %v206, %v208
    %v210 = vrot.slane %v202, %v209
    %v212 = vunpack.c.l.s4 1966171168
    %v213 = vunpack.c.0.s8 %v212
    %v214 = vlaneseq
    %v215 = vshrl.u32 %v214, 7
    %v216 = vsub.s32 %v213, %v215
    %v217 = vrot.slane %v203, %v216
    %v218 = vcombine.low %v210, %v217
    %219 = vset.pattern.permute.xlu0 0
    %220 = vperm.xlu0 %219, %v169
    %v221 = vpop.permute.xlu0 %220
    %222 = vset.pattern.permute.xlu0 0
    %223 = vperm.xlu0 %222, %v218
    %v224 = vpop.permute.xlu0 %223
    %v225 = vlaneseq
    %v226 = vshrl.u32 %v225, 7
    %v227 = vsub.s32 %v36, %v226
    %v228 = vrot.slane %v221, %v227
    %v229 = vadd.s32 %v36, 4294967288
    %v230 = vlaneseq
    %v231 = vshrl.u32 %v230, 7
    %v232 = vsub.s32 %v229, %v231
    %v233 = vrot.slane %v224, %v232
    %vm234 = vcmask 130112
    %v235 = vsel %vm234, %v233, %v228
    %v237 = vunpack.c.l.s4 1966171168
    %v238 = vunpack.c.0.s8 %v237
    %v239 = vlaneseq
    %v240 = vshrl.u32 %v239, 7
    %v241 = vsub.s32 %v238, %v240
    %v242 = vrot.slane %v235, %v241
    %v244 = vunpack.c.l.s4 1966171168
    %v245 = vunpack.c.0.s8 %v244
    %v246 = vlaneseq
    %v247 = vshrl.u32 %v246, 7
    %v248 = vsub.s32 %v245, %v247
    %v249 = vrot.slane %v242, %v248
    %v251 = vadd.f32 %v54, %v249
    %vm252 = vcmask 122880
    %253 = vst.msk [vmem:[#allocation2] sm:$0x1] %vm252, %v251
    // Predicated region
    $region22: #{tpu_custom_call.1} parent=1 // pred_check
      %p254 = pneg %p21
    $region23: #{tpu_custom_call.1} parent=1 // pred_check_branch
      %256 = sbr.rel (%p254) target = $region25
    $region24: #{tpu_custom_call.1} parent=1 // pred_region
      %v257 = vld [vmem:[%s2] sm:$0x1]
      %v258 = vld [vmem:[%s3] sm:$0x1]
      %v259 = vmul.f32 %v258, 0.2
      %v260 = vadd.f32 %v257, %v259
      %s261 = smul.u32 0, 16
      %v262 = vstv %s261
      %v263 = vadd.s32 %v262, %v36
      %vm264 = vcmp.lt.s32.totalorder %v263, 16
      %v265 = vld [vmem:[#allocation2] sm:$0x1]
      %v266 = vmul.f32 %v265, %v260
      %v267 = vsel %vm264, %v266, 0.0
      %268 = vst.msk [vmem:[#allocation4] sm:$0x1] %vm252, %v267
    $region25: #{tpu_custom_call.1} parent=1 // pred_fallthru
      _
    // Predicated region
    $region26: #{tpu_custom_call.1} parent=1 // pred_check
      _
    $region27: #{tpu_custom_call.1} parent=1 // pred_check_branch
      %270 = sbr.rel (0) target = $region29
    $region28: #{tpu_custom_call.1} parent=1 // pred_region
      %s272 = ssub.s32 16, 16
      %273 = vsyncadd [#allocation3], %s272
      %s275 = sshll.u32 [#allocation2], 4
      %s276 = int_to_ptr.vmem [resolvable:$true] %s275
      %278 = dma.vmem_to_hbm [thread:$0]  %s276, 16, %s4, [#allocation3]
    $region29: #{tpu_custom_call.1} parent=1 // pred_fallthru
      _
    // Predicated region
    $region30: #{tpu_custom_call.1} parent=1 // pred_check
      _
    $region31: #{tpu_custom_call.1} parent=1 // pred_check_branch
      %280 = sbr.rel (0) target = $region33
    $region32: #{tpu_custom_call.1} parent=1 // pred_region
      %s282 = ssub.s32 16, 16
      %283 = vsyncadd [#allocation5], %s282
      %s285 = sshll.u32 [#allocation4], 4
      %s286 = int_to_ptr.vmem [resolvable:$true] %s285
      %288 = dma.vmem_to_hbm [thread:$0]  %s286, 16, %s5, [#allocation5]
    $region33: #{tpu_custom_call.1} parent=1 // pred_fallthru
      _
    // Predicated region
    $region34: #{tpu_custom_call.1} parent=1 // pred_check
      _
    $region35: #{tpu_custom_call.1} parent=1 // pred_check_branch
      %290 = sbr.rel (0) target = $region37
    $region36: #{tpu_custom_call.1} parent=1 // pred_region
      %291 = dma.done [#allocation3], 16
    $region37: #{tpu_custom_call.1} parent=1 // pred_fallthru
      _
    // Predicated region
    $region38: #{tpu_custom_call.1} parent=1 // pred_check
      _
    $region39: #{tpu_custom_call.1} parent=1 // pred_check_branch
      %293 = sbr.rel (0) target = $region41
    $region40: #{tpu_custom_call.1} parent=1 // pred_region
      %294 = dma.done [#allocation5], 16
    $region41: #{tpu_custom_call.1} parent=1 // pred_fallthru
      _
    %295 = vsyncpa [#allocation3], 1
    %296 = vsyncpa [#allocation5], 1

</llo_original>
